<compile_context>
chip_gen: v7x
topology: tpu7x:2x2x1
jax: 0.10.0
libtpu: 0.0.40
codegen_flags: <defaults>
</compile_context>

<pallas_src>
import jax
import jax.numpy as jnp
from jax.experimental import pallas as pl
from jax.experimental.pallas import tpu as pltpu


def _round_up(x, m):
    return -(-x // m) * m


def _critic_kernel(s_ref, a_ref, w1_ref, b1_ref,
                   w2s_ref, w2a_ref, b2_ref,
                   w3_ref, b3_ref, o_ref):
    # fcs1: bf16 MXU matmul, f32 accumulation; bias-add + ReLU in f32.
    # dropout d1 == identity at inference.
    s = s_ref[...].astype(jnp.bfloat16)          # cast in-kernel (VPU, data in VMEM)
    h1 = jnp.dot(s, w1_ref[...], preferred_element_type=jnp.float32)
    h1 = jnp.maximum(h1 + b1_ref[...], 0.0)

    # fc2 on cat([h1, action]) == h1 @ W2[:F1] + action @ W2[F1:]
    a = a_ref[...].astype(jnp.bfloat16)
    h2 = jnp.dot(h1.astype(jnp.bfloat16), w2s_ref[...],
                 preferred_element_type=jnp.float32)
    h2 = h2 + jnp.dot(a, w2a_ref[...], preferred_element_type=jnp.float32)
    h2 = jnp.maximum(h2 + b2_ref[...], 0.0)      # dropout d2 == identity at inference

    # fc3: N=1 output -> VPU multiply + lane reduce (MXU stays free),
    # b3 read as a scalar from SMEM.
    q = jnp.sum(h2 * w3_ref[...], axis=-1, keepdims=True) + b3_ref[0, 0]

    # Lane-dense store: (tb, 1) -> (1, tb) transpose (XLU, has slack), so the
    # HBM writeback is a dense row slab instead of a 128-lane-padded column.
    o_ref[...] = q.T


def critic_forward(state, action, params, *, tb=None):
    """state: (B, state_size*num_agents) f32, action: (B, action_size*num_agents) f32."""
    w1, b1, w2s, w2a, b2, w3, b3 = params
    B, state_dim = state.shape
    action_dim = action.shape[1]
    f1 = w1.shape[1]
    f2 = w2s.shape[1]

    if tb is None:
        # Big enough to amortize the ~0.35us/step pipeline overhead, small
        # enough to give >=2 grid steps (v7x megacore) and to avoid huge
        # padding for tiny batches.
        tb = min(2048, _round_up(pl.cdiv(B, 2), 256))
        tb = min(tb, _round_up(B, 8))
    n_tiles = pl.cdiv(B, tb)

    out = pl.pallas_call(
        _critic_kernel,
        out_shape=jax.ShapeDtypeStruct((1, n_tiles * tb), jnp.float32),
        grid=(n_tiles,),
        in_specs=[
            pl.BlockSpec((tb, state_dim), lambda i: (i, 0)),     # state tile (f32)
            pl.BlockSpec((tb, action_dim), lambda i: (i, 0)),    # action tile (f32)
            pl.BlockSpec((state_dim, f1), lambda i: (0, 0)),     # w1   (resident, bf16)
            pl.BlockSpec((1, f1), lambda i: (0, 0)),             # b1   (resident, f32)
            pl.BlockSpec((f1, f2), lambda i: (0, 0)),            # w2s  (resident, bf16)
            pl.BlockSpec((action_dim, f2), lambda i: (0, 0)),    # w2a  (resident, bf16)
            pl.BlockSpec((1, f2), lambda i: (0, 0)),             # b2   (resident, f32)
            pl.BlockSpec((1, f2), lambda i: (0, 0)),             # w3   (resident, f32)
            pl.BlockSpec(memory_space=pltpu.MemorySpace.SMEM),   # b3 scalar
        ],
        out_specs=pl.BlockSpec((1, tb), lambda i: (0, i)),       # lane-dense output
        compiler_params=pltpu.CompilerParams(
            dimension_semantics=("parallel",)),
    )(state, action, w1, b1, w2s, w2a, b2, w3, b3)

    # Only the first B columns are valid (partial last tile rows are garbage
    # but cannot contaminate other rows).
    return out[0, :B][:, None]


def init_params(key, state_dim, action_dim, fcs1_units=256, fc2_units=256):
    """Deterministic init mirroring the PyTorch shapes.  Weights are
    pre-transposed to (in, out) and matmul weights pre-cast to bf16 ONCE here
    (not per call); no K-padding is needed since full-dim BlockSpecs are legal."""
    k1, k2, k3, k4, k5, k6 = jax.random.split(key, 6)
    lim1 = 1.0 / jnp.sqrt(jnp.float32(state_dim))
    lim2 = 1.0 / jnp.sqrt(jnp.float32(fcs1_units + action_dim))

    w1 = jax.random.uniform(k1, (state_dim, fcs1_units), jnp.float32, -lim1, lim1)
    b1 = jax.random.uniform(k4, (1, fcs1_units), jnp.float32, -lim1, lim1)

    w2 = jax.random.uniform(
        k2, (fcs1_units + action_dim, fc2_units), jnp.float32, -lim2, lim2)
    w2s = w2[:fcs1_units]                         # hidden part of the concat
    w2a = w2[fcs1_units:]                         # action part of the concat
    b2 = jax.random.uniform(k5, (1, fc2_units), jnp.float32, -lim2, lim2)

    w3 = jax.random.uniform(k3, (1, fc2_units), jnp.float32, -3e-3, 3e-3)  # fc3 row
    b3 = jax.random.uniform(k6, (1, 1), jnp.float32, -3e-3, 3e-3)
    return (w1.astype(jnp.bfloat16), b1,
            w2s.astype(jnp.bfloat16), w2a.astype(jnp.bfloat16), b2,
            w3, b3)


def critic_reference(state, action, params):
    """Plain-JAX reference with the same bf16/f32 mixed precision as the kernel."""
    w1, b1, w2s, w2a, b2, w3, b3 = params
    h1 = jnp.dot(state.astype(jnp.bfloat16), w1, preferred_element_type=jnp.float32)
    h1 = jnp.maximum(h1 + b1, 0.0)
    h2 = jnp.dot(h1.astype(jnp.bfloat16), w2s, preferred_element_type=jnp.float32)
    h2 = h2 + jnp.dot(action.astype(jnp.bfloat16), w2a,
                      preferred_element_type=jnp.float32)
    h2 = jnp.maximum(h2 + b2, 0.0)
    return jnp.sum(h2 * w3, axis=-1, keepdims=True) + b3[0, 0]


if __name__ == "__main__":
    # Small, forward-consistent shapes:
    #   state_size=8, action_size=2, num_agents=2, batch=8
    state_size, action_size, num_agents, batch = 8, 2, 2, 8
    state_dim = state_size * num_agents      # 16
    action_dim = action_size * num_agents    # 4

    key = jax.random.PRNGKey(0)
    kp, ks, ka = jax.random.split(key, 3)

    params = init_params(kp, state_dim, action_dim)
    state = jax.random.normal(ks, (batch, state_dim), jnp.float32)
    action = jax.random.normal(ka, (batch, action_dim), jnp.float32)

    q = critic_forward(state, action, params)
    jax.block_until_ready(q)

    q_ref = critic_reference(state, action, params)
    assert q.shape == (batch, 1)
    assert jnp.allclose(q, q_ref, atol=2e-3, rtol=2e-3), "mismatch vs reference"

    print("KERNEL_OK")
</pallas_src>

<mosaic_0001>
module attributes {stable_mosaic.version = 11 : i64} {
  func.func @_critic_kernel(%arg0: i32, %arg1: memref<8x16xf32, #tpu.memory_space<vmem>>, %arg2: memref<8x4xf32, #tpu.memory_space<vmem>>, %arg3: memref<16x256xbf16, #tpu.memory_space<vmem>>, %arg4: memref<1x256xf32, #tpu.memory_space<vmem>>, %arg5: memref<256x256xbf16, #tpu.memory_space<vmem>>, %arg6: memref<4x256xbf16, #tpu.memory_space<vmem>>, %arg7: memref<1x256xf32, #tpu.memory_space<vmem>>, %arg8: memref<1x256xf32, #tpu.memory_space<vmem>>, %arg9: memref<1x1xf32, #tpu.memory_space<smem>>, %arg10: memref<1x8xf32, #tpu.memory_space<vmem>>) attributes {dimension_semantics = [#tpu.dimension_semantics<parallel>], iteration_bounds = array<i64: 1>, scalar_prefetch = 0 : i64, scratch_operands = 0 : i64, tpu.core_type = #tpu.core_type<tc>, window_params = [{transform_indices = @transform_0, window_bounds = array<i64: 8, 16>}, {transform_indices = @transform_1, window_bounds = array<i64: 8, 4>}, {pipeline_mode = #tpu.pipeline_mode<synchronous>, transform_indices = @transform_2, window_bounds = array<i64: 16, 256>}, {pipeline_mode = #tpu.pipeline_mode<synchronous>, transform_indices = @transform_3, window_bounds = array<i64: 1, 256>}, {pipeline_mode = #tpu.pipeline_mode<synchronous>, transform_indices = @transform_4, window_bounds = array<i64: 256, 256>}, {pipeline_mode = #tpu.pipeline_mode<synchronous>, transform_indices = @transform_5, window_bounds = array<i64: 4, 256>}, {pipeline_mode = #tpu.pipeline_mode<synchronous>, transform_indices = @transform_6, window_bounds = array<i64: 1, 256>}, {pipeline_mode = #tpu.pipeline_mode<synchronous>, transform_indices = @transform_7, window_bounds = array<i64: 1, 256>}, {transform_indices = @transform_8, window_bounds = array<i64: 1, 1>}, {transform_indices = @transform_9, window_bounds = array<i64: 1, 8>}]} {
    %c0 = arith.constant 0 : index
    %c0_0 = arith.constant 0 : index
    %0 = vector.load %arg1[%c0, %c0_0] : memref<8x16xf32, #tpu.memory_space<vmem>>, vector<8x16xf32>
    %1 = arith.truncf %0 : vector<8x16xf32> to vector<8x16xbf16>
    %c0_1 = arith.constant 0 : index
    %c0_2 = arith.constant 0 : index
    %2 = vector.load %arg3[%c0_1, %c0_2] : memref<16x256xbf16, #tpu.memory_space<vmem>>, vector<16x256xbf16>
    %cst = arith.constant dense<0.000000e+00> : vector<8x256xf32>
    %3 = tpu.matmul %1, %2, %cst {dimension_numbers = #tpu.dot_dimension_numbers<[1], [0], [0], [1], [0, 0, 1, 1], [], []>} : vector<8x16xbf16>, vector<16x256xbf16>, vector<8x256xf32> -> vector<8x256xf32>
    %c0_3 = arith.constant 0 : index
    %c0_4 = arith.constant 0 : index
    %4 = vector.load %arg4[%c0_3, %c0_4] : memref<1x256xf32, #tpu.memory_space<vmem>>, vector<1x256xf32>
    %5 = vector.broadcast %4 : vector<1x256xf32> to vector<8x256xf32>
    %6 = arith.addf %3, %5 : vector<8x256xf32>
    %cst_5 = arith.constant 0.000000e+00 : f32
    %7 = vector.broadcast %cst_5 : f32 to vector<8x256xf32>
    %8 = arith.maximumf %6, %7 : vector<8x256xf32>
    %c0_6 = arith.constant 0 : index
    %c0_7 = arith.constant 0 : index
    %9 = vector.load %arg2[%c0_6, %c0_7] : memref<8x4xf32, #tpu.memory_space<vmem>>, vector<8x4xf32>
    %10 = arith.truncf %9 : vector<8x4xf32> to vector<8x4xbf16>
    %11 = arith.truncf %8 : vector<8x256xf32> to vector<8x256xbf16>
    %c0_8 = arith.constant 0 : index
    %c0_9 = arith.constant 0 : index
    %12 = vector.load %arg5[%c0_8, %c0_9] : memref<256x256xbf16, #tpu.memory_space<vmem>>, vector<256x256xbf16>
    %cst_10 = arith.constant dense<0.000000e+00> : vector<8x256xf32>
    %13 = tpu.matmul %11, %12, %cst_10 {dimension_numbers = #tpu.dot_dimension_numbers<[1], [0], [0], [1], [0, 0, 1, 1], [], []>} : vector<8x256xbf16>, vector<256x256xbf16>, vector<8x256xf32> -> vector<8x256xf32>
    %c0_11 = arith.constant 0 : index
    %c0_12 = arith.constant 0 : index
    %14 = vector.load %arg6[%c0_11, %c0_12] : memref<4x256xbf16, #tpu.memory_space<vmem>>, vector<4x256xbf16>
    %cst_13 = arith.constant dense<0.000000e+00> : vector<8x256xf32>
    %15 = tpu.matmul %10, %14, %cst_13 {dimension_numbers = #tpu.dot_dimension_numbers<[1], [0], [0], [1], [0, 0, 1, 1], [], []>} : vector<8x4xbf16>, vector<4x256xbf16>, vector<8x256xf32> -> vector<8x256xf32>
    %16 = arith.addf %13, %15 : vector<8x256xf32>
    %c0_14 = arith.constant 0 : index
    %c0_15 = arith.constant 0 : index
    %17 = vector.load %arg7[%c0_14, %c0_15] : memref<1x256xf32, #tpu.memory_space<vmem>>, vector<1x256xf32>
    %18 = vector.broadcast %17 : vector<1x256xf32> to vector<8x256xf32>
    %19 = arith.addf %16, %18 : vector<8x256xf32>
    %cst_16 = arith.constant 0.000000e+00 : f32
    %20 = vector.broadcast %cst_16 : f32 to vector<8x256xf32>
    %21 = arith.maximumf %19, %20 : vector<8x256xf32>
    %c0_17 = arith.constant 0 : index
    %c0_18 = arith.constant 0 : index
    %22 = vector.load %arg8[%c0_17, %c0_18] : memref<1x256xf32, #tpu.memory_space<vmem>>, vector<1x256xf32>
    %23 = vector.broadcast %22 : vector<1x256xf32> to vector<8x256xf32>
    %24 = arith.mulf %21, %23 : vector<8x256xf32>
    %cst_19 = arith.constant dense<0.000000e+00> : vector<8xf32>
    %25 = vector.multi_reduction <add>, %24, %cst_19 [1] : vector<8x256xf32> to vector<8xf32>
    %26 = vector.shape_cast %25 : vector<8xf32> to vector<8x1xf32>
    %c0_20 = arith.constant 0 : index
    %c0_21 = arith.constant 0 : index
    %27 = memref.load %arg9[%c0_20, %c0_21] : memref<1x1xf32, #tpu.memory_space<smem>>
    %28 = vector.broadcast %27 : f32 to vector<8x1xf32>
    %29 = arith.addf %26, %28 : vector<8x1xf32>
    %30 = tpu.transpose %29, [1, 0] : vector<8x1xf32> -> vector<1x8xf32>
    %c0_22 = arith.constant 0 : index
    %c0_23 = arith.constant 0 : index
    %31 = vector.load %arg10[%c0_22, %c0_23] : memref<1x8xf32, #tpu.memory_space<vmem>>, vector<1x8xf32>
    tpu.vector_store %arg10[%c0_22, %c0_23], %30 {strides = array<i32>} : memref<1x8xf32, #tpu.memory_space<vmem>>, vector<1x8xf32>,
    return
  }
  func.func @transform_0(%arg0: i32) -> (i32, i32) {
    %c0_i32 = arith.constant 0 : i32
    %c0_i32_0 = arith.constant 0 : i32
    return %arg0, %c0_i32 : i32, i32
  }
  func.func @transform_1(%arg0: i32) -> (i32, i32) {
    %c0_i32 = arith.constant 0 : i32
    %c0_i32_0 = arith.constant 0 : i32
    return %arg0, %c0_i32 : i32, i32
  }
  func.func @transform_2(%arg0: i32) -> (i32, i32) {
    %c0_i32 = arith.constant 0 : i32
    %c0_i32_0 = arith.constant 0 : i32
    %c0_i32_1 = arith.constant 0 : i32
    return %c0_i32, %c0_i32_0 : i32, i32
  }
  func.func @transform_3(%arg0: i32) -> (i32, i32) {
    %c0_i32 = arith.constant 0 : i32
    %c0_i32_0 = arith.constant 0 : i32
    %c0_i32_1 = arith.constant 0 : i32
    return %c0_i32, %c0_i32_0 : i32, i32
  }
  func.func @transform_4(%arg0: i32) -> (i32, i32) {
    %c0_i32 = arith.constant 0 : i32
    %c0_i32_0 = arith.constant 0 : i32
    %c0_i32_1 = arith.constant 0 : i32
    return %c0_i32, %c0_i32_0 : i32, i32
  }
  func.func @transform_5(%arg0: i32) -> (i32, i32) {
    %c0_i32 = arith.constant 0 : i32
    %c0_i32_0 = arith.constant 0 : i32
    %c0_i32_1 = arith.constant 0 : i32
    return %c0_i32, %c0_i32_0 : i32, i32
  }
  func.func @transform_6(%arg0: i32) -> (i32, i32) {
    %c0_i32 = arith.constant 0 : i32
    %c0_i32_0 = arith.constant 0 : i32
    %c0_i32_1 = arith.constant 0 : i32
    return %c0_i32, %c0_i32_0 : i32, i32
  }
  func.func @transform_7(%arg0: i32) -> (i32, i32) {
    %c0_i32 = arith.constant 0 : i32
    %c0_i32_0 = arith.constant 0 : i32
    %c0_i32_1 = arith.constant 0 : i32
    return %c0_i32, %c0_i32_0 : i32, i32
  }
  func.func @transform_8(%arg0: i32) -> (i32, i32) {
    %c0_i32 = arith.constant 0 : i32
    %c0_i32_0 = arith.constant 0 : i32
    %c0_i32_1 = arith.constant 0 : i32
    return %c0_i32, %c0_i32_0 : i32, i32
  }
  func.func @transform_9(%arg0: i32) -> (i32, i32) {
    %c0_i32 = arith.constant 0 : i32
    %c0_i32_0 = arith.constant 0 : i32
    return %c0_i32, %arg0 : i32, i32
  }
}

</mosaic_0001>

<llo_original>
// kernel: tpu_custom_call.1
$region0: #{tpu_custom_call.1}
  #allocation0 [shape = 'u32[]', space=smem, size = 0x4, offset = 0x4, fixed_abs, tag = 'smem constant byte address 0x4 - core index']
  #allocation1 [shape = 'u32[144,128]{1,0:T(1,128)}', space=vmem, size = 0x12000, scoped, tag = 'internal scratch']
  #allocation2 [shape = 'f32[1,1]{1,0:T(1,128)S(6)}', space=smem, size = 0x200, scoped, tag = 'scoped memory for tpu_custom_call.1']
  %s0 = inlined_call_operand.hbm [shape: f32[8,16], index: 0, kind: input, shape index: {}]
  %s1 = inlined_call_operand.vmem [shape: f32[8,4], index: 1, kind: input, shape index: {}]
  %s2 = inlined_call_operand.vmem [shape: bf16[16,256], index: 2, kind: input, shape index: {}]
  %s3 = inlined_call_operand.vmem [shape: f32[1,256], index: 3, kind: input, shape index: {}]
  %s4 = inlined_call_operand.hbm [shape: bf16[256,256], index: 4, kind: input, shape index: {}]
  %s5 = inlined_call_operand.vmem [shape: bf16[4,256], index: 5, kind: input, shape index: {}]
  %s6 = inlined_call_operand.vmem [shape: f32[1,256], index: 6, kind: input, shape index: {}]
  %s7 = inlined_call_operand.vmem [shape: f32[1,256], index: 7, kind: input, shape index: {}]
  %s8 = inlined_call_operand.<no memory space> [shape: f32[1,1], index: 8, kind: input, shape index: {}]
  %s9 = inlined_call_operand.hbm [shape: f32[1,8], index: 9, kind: output, shape index: {}]
  %s10 = sld [smem:[#allocation0]]
  $region54: #{tpu_custom_call.1} parent=0
    _
  %s12 = ssub.s32 1, %s10
  %s13 = scalar_select 0, %s12, %s10
  %14 = sst [smem:[#allocation2]] %s8
  $region1: #{tpu_custom_call.1} parent=0
    #allocation3 [shape = 'u8[4096]{0}', space=vmem, size = 0x1000, scoped, tag = 'input window, operand 0, single buffered']
    #allocation4 [shape = 's32[1]{0}', space=sflag, size = 0x4, scoped, tag = 'scoped memory for tpu_custom_call.1']
    #allocation5 [shape = 's32[1]{0}', space=sflag, size = 0x4, scoped, tag = 'scoped memory for tpu_custom_call.1']
    #allocation6 [shape = 'u8[131072]{0}', space=vmem, size = 0x20000, scoped, tag = 'input window, operand 4, single buffered']
    #allocation7 [shape = 's32[1]{0}', space=sflag, size = 0x4, scoped, tag = 'scoped memory for tpu_custom_call.1']
    #allocation8 [shape = 'u8[512]{0}', space=vmem, size = 0x400, scoped, tag = 'output window, operand 0, single buffered']
    %15 = vsyncpa [#allocation4], 0
    %16 = vsyncpa [#allocation7], 0
    %17 = vsyncpa [#allocation5], 0
    // Predicated region
    $region2: #{tpu_custom_call.1} parent=1 // pred_check
      _
    $region3: #{tpu_custom_call.1} parent=1 // pred_check_branch
      %19 = sbr.rel (0) target = $region5
    $region4: #{tpu_custom_call.1} parent=1 // pred_region
      %s21 = ssub.s32 128, 128
      %22 = vsyncadd [#allocation4], %s21
      %s24 = sshll.u32 [#allocation3], 4
      %s25 = int_to_ptr.vmem [resolvable:$true] %s24
      %27 = dma.hbm_to_vmem [thread:$0]  %s0, 128, %s25, [#allocation4]
    $region5: #{tpu_custom_call.1} parent=1 // pred_fallthru
      _
    // Predicated region
    $region6: #{tpu_custom_call.1} parent=1 // pred_check
      _
    $region7: #{tpu_custom_call.1} parent=1 // pred_check_branch
      %29 = sbr.rel (0) target = $region9
    $region8: #{tpu_custom_call.1} parent=1 // pred_region
      _
    $region9: #{tpu_custom_call.1} parent=1 // pred_fallthru
      _
    // Predicated region
    $region10: #{tpu_custom_call.1} parent=1 // pred_check
      _
    $region11: #{tpu_custom_call.1} parent=1 // pred_check_branch
      %31 = sbr.rel (0) target = $region13
    $region12: #{tpu_custom_call.1} parent=1 // pred_region
      _
    $region13: #{tpu_custom_call.1} parent=1 // pred_fallthru
      _
    // Predicated region
    $region14: #{tpu_custom_call.1} parent=1 // pred_check
      _
    $region15: #{tpu_custom_call.1} parent=1 // pred_check_branch
      %33 = sbr.rel (0) target = $region17
    $region16: #{tpu_custom_call.1} parent=1 // pred_region
      _
    $region17: #{tpu_custom_call.1} parent=1 // pred_fallthru
      _
    // Predicated region
    $region18: #{tpu_custom_call.1} parent=1 // pred_check
      _
    $region19: #{tpu_custom_call.1} parent=1 // pred_check_branch
      %35 = sbr.rel (0) target = $region21
    $region20: #{tpu_custom_call.1} parent=1 // pred_region
      %s37 = ssub.s32 4096, 4096
      %38 = vsyncadd [#allocation7], %s37
      %s39 = sshll.u32 [#allocation6], 4
      %s40 = int_to_ptr.vmem [resolvable:$true] %s39
      %45 = dma.hbm_to_vmem [thread:$0]  %s4, 4096, %s40, [#allocation7], 128, 128, 8
    $region21: #{tpu_custom_call.1} parent=1 // pred_fallthru
      _
    // Predicated region
    $region22: #{tpu_custom_call.1} parent=1 // pred_check
      _
    $region23: #{tpu_custom_call.1} parent=1 // pred_check_branch
      %47 = sbr.rel (0) target = $region25
    $region24: #{tpu_custom_call.1} parent=1 // pred_region
      _
    $region25: #{tpu_custom_call.1} parent=1 // pred_fallthru
      _
    // Predicated region
    $region26: #{tpu_custom_call.1} parent=1 // pred_check
      _
    $region27: #{tpu_custom_call.1} parent=1 // pred_check_branch
      %49 = sbr.rel (0) target = $region29
    $region28: #{tpu_custom_call.1} parent=1 // pred_region
      _
    $region29: #{tpu_custom_call.1} parent=1 // pred_fallthru
      _
    // Predicated region
    $region30: #{tpu_custom_call.1} parent=1 // pred_check
      _
    $region31: #{tpu_custom_call.1} parent=1 // pred_check_branch
      %51 = sbr.rel (0) target = $region33
    $region32: #{tpu_custom_call.1} parent=1 // pred_region
      _
    $region33: #{tpu_custom_call.1} parent=1 // pred_fallthru
      _
    // Predicated region
    $region34: #{tpu_custom_call.1} parent=1 // pred_check
      _
    $region35: #{tpu_custom_call.1} parent=1 // pred_check_branch
      %53 = sbr.rel (0) target = $region37
    $region36: #{tpu_custom_call.1} parent=1 // pred_region
      _
    $region37: #{tpu_custom_call.1} parent=1 // pred_fallthru
      _
    // Predicated region
    $region38: #{tpu_custom_call.1} parent=1 // pred_check
      _
    $region39: #{tpu_custom_call.1} parent=1 // pred_check_branch
      %55 = sbr.rel (0) target = $region41
    $region40: #{tpu_custom_call.1} parent=1 // pred_region
      %56 = dma.done [#allocation4], 128
    $region41: #{tpu_custom_call.1} parent=1 // pred_fallthru
      _
    // Predicated region
    $region42: #{tpu_custom_call.1} parent=1 // pred_check
      _
    $region43: #{tpu_custom_call.1} parent=1 // pred_check_branch
      %58 = sbr.rel (0) target = $region45
    $region44: #{tpu_custom_call.1} parent=1 // pred_region
      %59 = dma.done [#allocation7], 4096
    $region45: #{tpu_custom_call.1} parent=1 // pred_fallthru
      _
    %v61 = vld [vmem:[#allocation3] sm:$0xff]
    %v62 = vpack.c.bf16 %v61, %v61
    %v63 = vld [vmem:[%s2] sm:$0xff]
    %v64 = vld [vmem:[%s2 + $0x8] sm:$0xff]
    %v65 = vld [vmem:[%s3] sm:$0x3]
    %v67 = vlaneseq
    %v68 = vshrl.u32 %v67, 7
    %v69 = vsub.s32 0, %v68
    %v70 = vrot.slane %v65, %v69
    %v71 = vlaneseq
    %v72 = vshrl.u32 %v71, 7
    %v73 = vsub.s32 1, %v72
    %v74 = vrot.slane %v65, %v73
    %v79 = vunpack.c.l.b16 %v63
    %v80 = vunpack.c.h.b16 %v63
    %v81 = vunpack.c.l.b16 %v64
    %v82 = vunpack.c.h.b16 %v64
    %v83 = vpack.c.b16 %v81, %v79
    %v84 = vpack.c.b16 %v82, %v80
    %vm87 = vcmask 130048
    %v89 = vsel %vm87, %v62, 0
    %91 = vmatprep.subr.bf16.mxu0 %v84
    %92 = vmatpush1.bf16.msra.mxu0 %v83
    %93 = vmatprep.subr.bf16.mxu0 0
    %94 = vmatpush1.bf16.msra.mxu0 0
    %95 = vmatprep.subr.bf16.mxu0 0
    %96 = vmatpush1.bf16.msra.mxu0 0
    %97 = vmatprep.subr.bf16.mxu0 0
    %98 = vmatpush1.bf16.msra.mxu0 0
    %99 = vmatprep.subr.bf16.mxu0 0
    %100 = vmatpush1.bf16.msra.mxu0 0
    %101 = vmatprep.subr.bf16.mxu0 0
    %102 = vmatpush1.bf16.msra.mxu0 0
    %103 = vmatprep.subr.bf16.mxu0 0
    %104 = vmatpush1.bf16.msra.mxu0 0
    %105 = vmatprep.subr.bf16.mxu0 0
    %106 = vmatpush1.bf16.msra.mxu0 0
    %107 = vmatprep.subr.bf16.mxu0 0
    %108 = vmatpush1.bf16.msra.mxu0 0
    %109 = vmatprep.subr.bf16.mxu0 0
    %110 = vmatpush1.bf16.msra.mxu0 0
    %111 = vmatprep.subr.bf16.mxu0 0
    %112 = vmatpush1.bf16.msra.mxu0 0
    %113 = vmatprep.subr.bf16.mxu0 0
    %114 = vmatpush1.bf16.msra.mxu0 0
    %115 = vmatprep.subr.bf16.mxu0 0
    %116 = vmatpush1.bf16.msra.mxu0 0
    %117 = vmatprep.subr.bf16.mxu0 0
    %118 = vmatpush1.bf16.msra.mxu0 0
    %119 = vmatprep.subr.bf16.mxu0 0
    %120 = vmatpush1.bf16.msra.mxu0 0
    %121 = vmatprep.subr.bf16.mxu0 0
    %122 = vmatpush1.bf16.msra.mxu0 0
    %123 = vmatprep.mubr.bf16.mxu0 0
    %124 = vmatmul.mubr.bf16.gmra.mrb[0].mxu0 %v89
    %v125 = vpop.f32.mrb[0].mxu0
    %v126 = vadd.f32 %v70, %v125
    %v127 = vpop.f32.mrb[0].mxu0
    %v128 = vadd.f32 %v74, %v127
    %v129 = vpop.f32.mrb[0].mxu0
    %v130 = vpop.f32.mrb[0].mxu0
    %131 = vdwg.mxu0
    %v132 = vmax.f32 %v126, 0.0
    %v133 = vmax.f32 %v128, 0.0
    %v134 = vld [vmem:[%s1] sm:$0xff]
    %v135 = vpack.c.bf16 %v134, %v134
    %v136 = vpack.c.bf16 %v132, %v132
    %v137 = vpack.c.bf16 %v133, %v133
    %v138 = vld [vmem:[#allocation6] sm:$0xff]
    %v139 = vld [vmem:[#allocation6 + $0x8] sm:$0xff]
    %v140 = vld [vmem:[#allocation6 + $0x10] sm:$0xff]
    %v141 = vld [vmem:[#allocation6 + $0x18] sm:$0xff]
    %v142 = vld [vmem:[#allocation6 + $0x20] sm:$0xff]
    %v143 = vld [vmem:[#allocation6 + $0x28] sm:$0xff]
    %v144 = vld [vmem:[#allocation6 + $0x30] sm:$0xff]
    %v145 = vld [vmem:[#allocation6 + $0x38] sm:$0xff]
    %v146 = vld [vmem:[#allocation6 + $0x40] sm:$0xff]
    %v147 = vld [vmem:[#allocation6 + $0x48] sm:$0xff]
    %v148 = vld [vmem:[#allocation6 + $0x50] sm:$0xff]
    %v149 = vld [vmem:[#allocation6 + $0x58] sm:$0xff]
    %v150 = vld [vmem:[#allocation6 + $0x60] sm:$0xff]
    %v151 = vld [vmem:[#allocation6 + $0x68] sm:$0xff]
    %v152 = vld [vmem:[#allocation6 + $0x70] sm:$0xff]
    %v153 = vld [vmem:[#allocation6 + $0x78] sm:$0xff]
    %v154 = vld [vmem:[#allocation6 + $0x80] sm:$0xff]
    %v155 = vld [vmem:[#allocation6 + $0x88] sm:$0xff]
    %v156 = vld [vmem:[#allocation6 + $0x90] sm:$0xff]
    %v157 = vld [vmem:[#allocation6 + $0x98] sm:$0xff]
    %v158 = vld [vmem:[#allocation6 + $0xa0] sm:$0xff]
    %v159 = vld [vmem:[#allocation6 + $0xa8] sm:$0xff]
    %v160 = vld [vmem:[#allocation6 + $0xb0] sm:$0xff]
    %v161 = vld [vmem:[#allocation6 + $0xb8] sm:$0xff]
    %v162 = vld [vmem:[#allocation6 + $0xc0] sm:$0xff]
    %v163 = vld [vmem:[#allocation6 + $0xc8] sm:$0xff]
    %v164 = vld [vmem:[#allocation6 + $0xd0] sm:$0xff]
    %v165 = vld [vmem:[#allocation6 + $0xd8] sm:$0xff]
    %v166 = vld [vmem:[#allocation6 + $0xe0] sm:$0xff]
    %v167 = vld [vmem:[#allocation6 + $0xe8] sm:$0xff]
    %v168 = vld [vmem:[#allocation6 + $0xf0] sm:$0xff]
    %v169 = vld [vmem:[#allocation6 + $0xf8] sm:$0xff]
    %v170 = vld [vmem:[%s5] sm:$0xf]
    %v173 = vunpack.c.l.s4 1983009808
    %v174 = vunpack.c.0.s8 %v173
    %v175 = vlaneseq
    %v176 = vshrl.u32 %v175, 7
    %v177 = vsub.s32 %v174, %v176
    %v178 = vrot.slane %v170, %v177
    %v179 = vcombine.high %v178, %v178
    %vm180 = vcmask 31744
    %v182 = vsel %vm180, %v135, 0
    %vm184 = vcmask 1041408
    %v186 = vsel %vm184, %v178, 0
    %v189 = vsel %vm184, %v179, 0
    %191 = vmatprep.subr.bf16.mxu0 %v189
    %192 = vmatpush1.bf16.msra.mxu0 %v186
    %193 = vmatprep.subr.bf16.mxu0 0
    %194 = vmatpush1.bf16.msra.mxu0 0
    %195 = vmatprep.subr.bf16.mxu0 0
    %196 = vmatpush1.bf16.msra.mxu0 0
    %197 = vmatprep.subr.bf16.mxu0 0
    %198 = vmatpush1.bf16.msra.mxu0 0
    %199 = vmatprep.subr.bf16.mxu0 0
    %200 = vmatpush1.bf16.msra.mxu0 0
    %201 = vmatprep.subr.bf16.mxu0 0
    %202 = vmatpush1.bf16.msra.mxu0 0
    %203 = vmatprep.subr.bf16.mxu0 0
    %204 = vmatpush1.bf16.msra.mxu0 0
    %205 = vmatprep.subr.bf16.mxu0 0
    %206 = vmatpush1.bf16.msra.mxu0 0
    %207 = vmatprep.subr.bf16.mxu0 0
    %208 = vmatpush1.bf16.msra.mxu0 0
    %209 = vmatprep.subr.bf16.mxu0 0
    %210 = vmatpush1.bf16.msra.mxu0 0
    %211 = vmatprep.subr.bf16.mxu0 0
    %212 = vmatpush1.bf16.msra.mxu0 0
    %213 = vmatprep.subr.bf16.mxu0 0
    %214 = vmatpush1.bf16.msra.mxu0 0
    %215 = vmatprep.subr.bf16.mxu0 0
    %216 = vmatpush1.bf16.msra.mxu0 0
    %217 = vmatprep.subr.bf16.mxu0 0
    %218 = vmatpush1.bf16.msra.mxu0 0
    %219 = vmatprep.subr.bf16.mxu0 0
    %220 = vmatpush1.bf16.msra.mxu0 0
    %221 = vmatprep.subr.bf16.mxu0 0
    %222 = vmatpush1.bf16.msra.mxu0 0
    %223 = vmatprep.mubr.bf16.mxu0 0
    %224 = vmatmul.mubr.bf16.gmra.mrb[0].mxu0 %v182
    %v225 = vpop.f32.mrb[0].mxu0
    %v226 = vadd.f32 0.0, %v225
    %v227 = vpop.f32.mrb[0].mxu0
    %v228 = vadd.f32 0.0, %v227
    %v229 = vpop.f32.mrb[0].mxu0
    %v230 = vpop.f32.mrb[0].mxu0
    %231 = vdwg.mxu0
    %v264 = vunpack.c.l.b16 %v138
    %v265 = vunpack.c.h.b16 %v138
    %v266 = vunpack.c.l.b16 %v139
    %v267 = vunpack.c.h.b16 %v139
    %v268 = vunpack.c.l.b16 %v140
    %v269 = vunpack.c.h.b16 %v140
    %v270 = vunpack.c.l.b16 %v141
    %v271 = vunpack.c.h.b16 %v141
    %v272 = vunpack.c.l.b16 %v142
    %v273 = vunpack.c.h.b16 %v142
    %v274 = vunpack.c.l.b16 %v143
    %v275 = vunpack.c.h.b16 %v143
    %v276 = vunpack.c.l.b16 %v144
    %v277 = vunpack.c.h.b16 %v144
    %v278 = vunpack.c.l.b16 %v145
    %v279 = vunpack.c.h.b16 %v145
    %v280 = vunpack.c.l.b16 %v146
    %v281 = vunpack.c.h.b16 %v146
    %v282 = vunpack.c.l.b16 %v147
    %v283 = vunpack.c.h.b16 %v147
    %v284 = vunpack.c.l.b16 %v148
    %v285 = vunpack.c.h.b16 %v148
    %v286 = vunpack.c.l.b16 %v149
    %v287 = vunpack.c.h.b16 %v149
    %v288 = vunpack.c.l.b16 %v150
    %v289 = vunpack.c.h.b16 %v150
    %v290 = vunpack.c.l.b16 %v151
    %v291 = vunpack.c.h.b16 %v151
    %v292 = vunpack.c.l.b16 %v152
    %v293 = vunpack.c.h.b16 %v152
    %v294 = vunpack.c.l.b16 %v153
    %v295 = vunpack.c.h.b16 %v153
    %v296 = vunpack.c.l.b16 %v154
    %v297 = vunpack.c.h.b16 %v154
    %v298 = vunpack.c.l.b16 %v155
    %v299 = vunpack.c.h.b16 %v155
    %v300 = vunpack.c.l.b16 %v156
    %v301 = vunpack.c.h.b16 %v156
    %v302 = vunpack.c.l.b16 %v157
    %v303 = vunpack.c.h.b16 %v157
    %v304 = vunpack.c.l.b16 %v158
    %v305 = vunpack.c.h.b16 %v158
    %v306 = vunpack.c.l.b16 %v159
    %v307 = vunpack.c.h.b16 %v159
    %v308 = vunpack.c.l.b16 %v160
    %v309 = vunpack.c.h.b16 %v160
    %v310 = vunpack.c.l.b16 %v161
    %v311 = vunpack.c.h.b16 %v161
    %v312 = vunpack.c.l.b16 %v162
    %v313 = vunpack.c.h.b16 %v162
    %v314 = vunpack.c.l.b16 %v163
    %v315 = vunpack.c.h.b16 %v163
    %v316 = vunpack.c.l.b16 %v164
    %v317 = vunpack.c.h.b16 %v164
    %v318 = vunpack.c.l.b16 %v165
    %v319 = vunpack.c.h.b16 %v165
    %v320 = vunpack.c.l.b16 %v166
    %v321 = vunpack.c.h.b16 %v166
    %v322 = vunpack.c.l.b16 %v167
    %v323 = vunpack.c.h.b16 %v167
    %v324 = vunpack.c.l.b16 %v168
    %v325 = vunpack.c.h.b16 %v168
    %v326 = vunpack.c.l.b16 %v169
    %v327 = vunpack.c.h.b16 %v169
    %v328 = vpack.c.b16 %v266, %v264
    %v329 = vpack.c.b16 %v267, %v265
    %v330 = vpack.c.b16 %v270, %v268
    %v331 = vpack.c.b16 %v271, %v269
    %v332 = vpack.c.b16 %v274, %v272
    %v333 = vpack.c.b16 %v275, %v273
    %v334 = vpack.c.b16 %v278, %v276
    %v335 = vpack.c.b16 %v279, %v277
    %v336 = vpack.c.b16 %v282, %v280
    %v337 = vpack.c.b16 %v283, %v281
    %v338 = vpack.c.b16 %v286, %v284
    %v339 = vpack.c.b16 %v287, %v285
    %v340 = vpack.c.b16 %v290, %v288
    %v341 = vpack.c.b16 %v291, %v289
    %v342 = vpack.c.b16 %v294, %v292
    %v343 = vpack.c.b16 %v295, %v293
    %v344 = vpack.c.b16 %v298, %v296
    %v345 = vpack.c.b16 %v299, %v297
    %v346 = vpack.c.b16 %v302, %v300
    %v347 = vpack.c.b16 %v303, %v301
    %v348 = vpack.c.b16 %v306, %v304
    %v349 = vpack.c.b16 %v307, %v305
    %v350 = vpack.c.b16 %v310, %v308
    %v351 = vpack.c.b16 %v311, %v309
    %v352 = vpack.c.b16 %v314, %v312
    %v353 = vpack.c.b16 %v315, %v313
    %v354 = vpack.c.b16 %v318, %v316
    %v355 = vpack.c.b16 %v319, %v317
    %v356 = vpack.c.b16 %v322, %v320
    %v357 = vpack.c.b16 %v323, %v321
    %v358 = vpack.c.b16 %v326, %v324
    %v359 = vpack.c.b16 %v327, %v325
    %392 = vmatprep.subr.bf16.mxu0 %v329
    %393 = vmatpush1.bf16.msra.mxu0 %v328
    %394 = vmatprep.subr.bf16.mxu0 %v331
    %395 = vmatpush1.bf16.msra.mxu0 %v330
    %396 = vmatprep.subr.bf16.mxu0 %v333
    %397 = vmatpush1.bf16.msra.mxu0 %v332
    %398 = vmatprep.subr.bf16.mxu0 %v335
    %399 = vmatpush1.bf16.msra.mxu0 %v334
    %400 = vmatprep.subr.bf16.mxu0 %v337
    %401 = vmatpush1.bf16.msra.mxu0 %v336
    %402 = vmatprep.subr.bf16.mxu0 %v339
    %403 = vmatpush1.bf16.msra.mxu0 %v338
    %404 = vmatprep.subr.bf16.mxu0 %v341
    %405 = vmatpush1.bf16.msra.mxu0 %v340
    %406 = vmatprep.subr.bf16.mxu0 %v343
    %407 = vmatpush1.bf16.msra.mxu0 %v342
    %408 = vmatprep.subr.bf16.mxu0 %v345
    %409 = vmatpush1.bf16.msra.mxu0 %v344
    %410 = vmatprep.subr.bf16.mxu0 %v347
    %411 = vmatpush1.bf16.msra.mxu0 %v346
    %412 = vmatprep.subr.bf16.mxu0 %v349
    %413 = vmatpush1.bf16.msra.mxu0 %v348
    %414 = vmatprep.subr.bf16.mxu0 %v351
    %415 = vmatpush1.bf16.msra.mxu0 %v350
    %416 = vmatprep.subr.bf16.mxu0 %v353
    %417 = vmatpush1.bf16.msra.mxu0 %v352
    %418 = vmatprep.subr.bf16.mxu0 %v355
    %419 = vmatpush1.bf16.msra.mxu0 %v354
    %420 = vmatprep.subr.bf16.mxu0 %v357
    %421 = vmatpush1.bf16.msra.mxu0 %v356
    %422 = vmatprep.subr.bf16.mxu0 %v359
    %423 = vmatpush1.bf16.msra.mxu0 %v358
    %424 = vmatprep.mubr.bf16.mxu0 %v137
    %425 = vmatmul.mubr.bf16.gmra.mrb[0].mxu0 %v136
    %v426 = vpop.f32.mrb[0].mxu0
    %v427 = vadd.f32 %v226, %v426
    %v428 = vpop.f32.mrb[0].mxu0
    %v429 = vadd.f32 %v228, %v428
    %v430 = vpop.f32.mrb[0].mxu0
    %v431 = vpop.f32.mrb[0].mxu0
    %432 = vdwg.mxu0
    %v433 = vld [vmem:[%s6] sm:$0x3]
    %v435 = vlaneseq
    %v436 = vshrl.u32 %v435, 7
    %v437 = vsub.s32 0, %v436
    %v438 = vrot.slane %v433, %v437
    %v439 = vlaneseq
    %v440 = vshrl.u32 %v439, 7
    %v441 = vsub.s32 1, %v440
    %v442 = vrot.slane %v433, %v441
    %v445 = vadd.f32 %v427, %v438
    %v446 = vadd.f32 %v429, %v442
    %v447 = vmax.f32 %v445, 0.0
    %v448 = vmax.f32 %v446, 0.0
    %v449 = vld [vmem:[%s7] sm:$0x3]
    %v451 = vlaneseq
    %v452 = vshrl.u32 %v451, 7
    %v453 = vsub.s32 0, %v452
    %v454 = vrot.slane %v449, %v453
    %v455 = vlaneseq
    %v456 = vshrl.u32 %v455, 7
    %v457 = vsub.s32 1, %v456
    %v458 = vrot.slane %v449, %v457
    %v461 = vmul.f32 %v447, %v454
    %v462 = vmul.f32 %v448, %v458
    %v463 = vadd.f32 %v461, %v462
    %464 = vadd.xlane.f32.xlu0 %v463
    %v465 = vpop.xlane.xlu0 %464
    %s466 = sld [smem:[#allocation2]]
    %v467 = vstv %s466
    %v468 = vadd.f32 %v465, %v467
    %469 = vxpose.xlu0.b32.start [1/16] %v468, 128
    %470 = vxpose.xlu0.b32.cont [2/16] 0.0, 128
    %471 = vxpose.xlu0.b32.cont [3/16] 0.0, 128
    %472 = vxpose.xlu0.b32.cont [4/16] 0.0, 128
    %473 = vxpose.xlu0.b32.cont [5/16] 0.0, 128
    %474 = vxpose.xlu0.b32.cont [6/16] 0.0, 128
    %475 = vxpose.xlu0.b32.cont [7/16] 0.0, 128
    %476 = vxpose.xlu0.b32.cont [8/16] 0.0, 128
    %477 = vxpose.xlu0.b32.cont [9/16] 0.0, 128
    %478 = vxpose.xlu0.b32.cont [10/16] 0.0, 128
    %479 = vxpose.xlu0.b32.cont [11/16] 0.0, 128
    %480 = vxpose.xlu0.b32.cont [12/16] 0.0, 128
    %481 = vxpose.xlu0.b32.cont [13/16] 0.0, 128
    %482 = vxpose.xlu0.b32.cont [14/16] 0.0, 128
    %483 = vxpose.xlu0.b32.cont [15/16] 0.0, 128
    %484 = vxpose.xlu0.b32.end [16/16] 0.0, 128
    %v485 = vpop.trf.xlu0
    %v486 = vpop.trf.xlu0
    %v487 = vpop.trf.xlu0
    %v488 = vpop.trf.xlu0
    %v489 = vpop.trf.xlu0
    %v490 = vpop.trf.xlu0
    %v491 = vpop.trf.xlu0
    %v492 = vpop.trf.xlu0
    %v493 = vpop.trf.xlu0
    %v494 = vpop.trf.xlu0
    %v495 = vpop.trf.xlu0
    %v496 = vpop.trf.xlu0
    %v497 = vpop.trf.xlu0
    %v498 = vpop.trf.xlu0
    %v499 = vpop.trf.xlu0
    %v500 = vpop.trf.xlu0
    %vm501 = vcmask 57344
    %502 = vst.msk [vmem:[#allocation8] sm:$0x1] %vm501, %v485
    // Predicated region
    $region46: #{tpu_custom_call.1} parent=1 // pred_check
      _
    $region47: #{tpu_custom_call.1} parent=1 // pred_check_branch
      %504 = sbr.rel (0) target = $region49
    $region48: #{tpu_custom_call.1} parent=1 // pred_region
      %s506 = ssub.s32 16, 16
      %507 = vsyncadd [#allocation5], %s506
      %s509 = sshll.u32 [#allocation8], 4
      %s510 = int_to_ptr.vmem [resolvable:$true] %s509
      %512 = dma.vmem_to_hbm [thread:$0]  %s510, 16, %s9, [#allocation5]
    $region49: #{tpu_custom_call.1} parent=1 // pred_fallthru
      _
    // Predicated region
    $region50: #{tpu_custom_call.1} parent=1 // pred_check
      _
    $region51: #{tpu_custom_call.1} parent=1 // pred_check_branch
      %514 = sbr.rel (0) target = $region53
    $region52: #{tpu_custom_call.1} parent=1 // pred_region
      %515 = dma.done [#allocation5], 16
    $region53: #{tpu_custom_call.1} parent=1 // pred_fallthru
      _
    %516 = vsyncpa [#allocation4], 1
    %517 = vsyncpa [#allocation7], 1
    %518 = vsyncpa [#allocation5], 1

</llo_original>
